<compile_context>
chip_gen: v7x
topology: tpu7x:2x2x1
jax: 0.10.0
libtpu: 0.0.40
codegen_flags: <defaults>
</compile_context>

<pallas_src>
import functools

import jax
import jax.numpy as jnp
from jax import lax
from jax.experimental import pallas as pl
from jax.experimental.pallas import tpu as pltpu

LANES = 128               # lane width: last dim of every tile
DEFAULT_TILE_ROWS = 1024  # (1024, 128) f32 tile; 2 inputs x 2 bufs ~= 4 MiB


def _focal_elementwise(x, t, alpha, gamma):
    """Focal-with-logits loss, elementwise, in f32.

    Stable/EUP-lean restructure of the torch formula (1 exp + 1 log +
    1 exact reciprocal per element):
        s          = exp(-|x|)                      in (0, 1]
        sigmoid(x) = 1/(1+s) or s/(1+s)             (sign select)
        log(pt)    = -softplus(-x),  log(1-pt) = -softplus(x)
    """
    s = jnp.exp(-jnp.abs(x))
    inv = 1.0 / (1.0 + s)            # = max(pt, 1-pt)
    small = s * inv                  # = min(pt, 1-pt)
    lse = jnp.log(1.0 + s)           # = softplus(-|x|) in (0, log 2]
    pos = x >= 0.0
    pt = jnp.where(pos, inv, small)
    one_m_pt = jnp.where(pos, small, inv)
    log_pt = jnp.where(pos, -lse, x - lse)       # log(sigmoid(x))
    log_1m = jnp.where(pos, -x - lse, -lse)      # log(1 - sigmoid(x))
    if float(gamma).is_integer():
        g = int(gamma)
        w_pos = lax.integer_pow(one_m_pt, g)     # (1-pt)**gamma, VPU only
        w_neg = lax.integer_pow(pt, g)           # pt**gamma
    else:
        # Reuse the logs: y**g = exp(g*log y) -> 2 extra exps, no extra logs.
        w_pos = jnp.exp(gamma * log_1m)
        w_neg = jnp.exp(gamma * log_pt)
    return (-alpha) * w_pos * t * log_pt - (1.0 - alpha) * w_neg * (1.0 - t) * log_1m


# ---------------------------------------------------------------------------
# Kernels
# ---------------------------------------------------------------------------

def _focal_sum_kernel(x_ref, t_ref, out_ref, *, alpha, gamma, full_rows, rem,
                      tile_rows, steps, maybe_partial):
    p = pl.program_id(0)          # parallel partition (megacore on v7x)
    i = pl.program_id(1)          # sequential reduction axis

    @pl.when(i == 0)
    def _():
        out_ref[...] = jnp.zeros_like(out_ref)

    x = x_ref[...].astype(jnp.float32)
    t = t_ref[...].astype(jnp.float32)

    def fold(loss):
        # (tile_rows, LANES) -> (8, LANES): regroup along the native (8,128)
        # sublane-tile boundary (free) and add vreg-wise on the VPU.
        return loss.reshape(tile_rows // 8, 8, LANES).sum(axis=0)

    if not maybe_partial:
        # Static fast path: every tile in the grid is full and real.
        out_ref[...] += fold(_focal_elementwise(x, t, alpha, gamma))
        return

    blk = p * steps + i                          # logical (unclamped) tile id
    is_full = (blk + 1) * tile_rows <= full_rows  # all elements of tile valid

    @pl.when(is_full)
    def _():                                      # maskless fast path
        out_ref[...] += fold(_focal_elementwise(x, t, alpha, gamma))

    @pl.when(jnp.logical_not(is_full))
    def _():                                      # tail / redundant tiles
        grow = blk * tile_rows + lax.broadcasted_iota(
            jnp.int32, (tile_rows, LANES), 0)
        col = lax.broadcasted_iota(jnp.int32, (tile_rows, LANES), 1)
        # Row-level bounds: no flat int32 element index -> no overflow risk.
        valid = (grow < full_rows) | ((grow == full_rows) & (col < rem))
        xs = jnp.where(valid, x, 0.0)
        ts = jnp.where(valid, t, 0.0)
        loss = jnp.where(valid, _focal_elementwise(xs, ts, alpha, gamma), 0.0)
        out_ref[...] += fold(loss)


def _focal_map_kernel(x_ref, t_ref, o_ref, *, alpha, gamma):
    x = x_ref[...].astype(jnp.float32)
    t = t_ref[...].astype(jnp.float32)
    o_ref[...] = _focal_elementwise(x, t, alpha, gamma).astype(o_ref.dtype)


# ---------------------------------------------------------------------------
# Wrapper
# ---------------------------------------------------------------------------

def _as_lane2d(a):
    """Flatten to a lane-dense (rows, LANES) slab in the input's NATIVE dtype.

    Only pads (one extra XLA copy) when the element count is not already a
    multiple of LANES; the common NCHW feature-map case reshapes for free."""
    flat = a.reshape(-1)
    n = flat.shape[0]
    rows = pl.cdiv(n, LANES)
    pad = rows * LANES - n
    if pad:
        flat = jnp.pad(flat, (0, pad))
    return flat.reshape(rows, LANES), n


def _choose_tile_rows(rows, max_tile_rows):
    """Pick a row-tile that is a multiple of 8 (so the in-kernel (8,LANES)
    fold is shape-legal), as large as possible, and preferably dividing
    `rows` exactly so the wrapper never needs a second jnp.pad pass."""
    max_tile_rows = max(8, max_tile_rows - max_tile_rows % 8)
    if rows <= max_tile_rows:
        return rows + (-rows) % 8     # single block, rounded up to 8 sublanes
    hi = max_tile_rows
    lo = max(8, min(256, hi))
    for tr in range(hi, lo - 1, -8):  # step of 8: f32/bf16 sublane-legal
        if rows % tr == 0:
            return tr
    return hi                          # fallback: wrapper pads rows


def _pad_rows(a2d, rows_work):
    pad = rows_work - a2d.shape[0]
    if pad:
        a2d = jnp.pad(a2d, ((0, pad), (0, 0)))
    return a2d


def focal_with_logits_loss(inputs, targets, alpha=1.0, gamma=3.0,
                           reduction=True, out_dtype=None,
                           max_tile_rows=DEFAULT_TILE_ROWS):
    """JAX/Pallas equivalent of FocalWithLogitsLoss.forward.

    Inputs may be f32 or bf16/fp16 (HBM reads stay in the native dtype; all
    math runs in f32 in-kernel).  With reduction=True returns an f32 scalar
    mean; with reduction=False returns an elementwise loss in `out_dtype`
    (defaults to the input dtype)."""
    alpha = float(alpha)
    gamma = float(gamma)
    orig_shape = inputs.shape

    x2d, n = _as_lane2d(inputs)
    t2d, _ = _as_lane2d(targets)
    rows = x2d.shape[0]

    tile_rows = _choose_tile_rows(rows, max_tile_rows)
    rows_work = pl.cdiv(rows, tile_rows) * tile_rows
    x2d = _pad_rows(x2d, rows_work)
    t2d = _pad_rows(t2d, rows_work)
    total_blocks = rows_work // tile_rows
    full_rows, rem = divmod(n, LANES)

    if reduction:
        # Leading 2-way "parallel" axis lets v7x run the two halves of the
        # reduction on its two TensorCores; on v5e/v6e it is just a loop.
        num_parts = 2 if total_blocks >= 2 else 1
        steps = pl.cdiv(total_blocks, num_parts)
        # If there is no padded tail and no redundant clamped tile, the
        # masked branch is never needed and is not even traced.
        maybe_partial = (rows_work * LANES != n) or (num_parts * steps != total_blocks)

        def in_map(part, step):
            # Clamp the (at most one) redundant tile of an odd split onto the
            # last real tile; the in-kernel mask zeroes its contribution.
            return (jnp.minimum(part * steps + step, total_blocks - 1), 0)

        in_spec = pl.BlockSpec((tile_rows, LANES), in_map)

        partials = pl.pallas_call(
            functools.partial(_focal_sum_kernel, alpha=alpha, gamma=gamma,
                              full_rows=full_rows, rem=rem,
                              tile_rows=tile_rows, steps=steps,
                              maybe_partial=maybe_partial),
            out_shape=jax.ShapeDtypeStruct((num_parts * 8, LANES), jnp.float32),
            grid=(num_parts, steps),
            in_specs=[in_spec, in_spec],
            out_specs=pl.BlockSpec((8, LANES), lambda part, step: (part, 0)),
            compiler_params=pltpu.CompilerParams(
                dimension_semantics=("parallel", "arbitrary")),
        )(x2d, t2d)
        return jnp.sum(partials) / jnp.float32(n)

    if out_dtype is None:
        out_dtype = inputs.dtype
    io_spec = pl.BlockSpec((tile_rows, LANES), lambda i: (i, 0))
    loss2d = pl.pallas_call(
        functools.partial(_focal_map_kernel, alpha=alpha, gamma=gamma),
        out_shape=jax.ShapeDtypeStruct((rows_work, LANES), out_dtype),
        grid=(total_blocks,),
        in_specs=[io_spec, io_spec],
        out_specs=io_spec,
        compiler_params=pltpu.CompilerParams(
            dimension_semantics=("parallel",)),
    )(x2d, t2d)
    flat = loss2d.reshape(-1)
    if flat.shape[0] != n:
        flat = flat[:n]
    return flat.reshape(orig_shape)


# ---------------------------------------------------------------------------
# Reference (literal torch formula) and tests
# ---------------------------------------------------------------------------

def _reference(inputs, targets, alpha=1.0, gamma=3.0, reduction=True):
    x = inputs.astype(jnp.float32)
    t = targets.astype(jnp.float32)
    pt = jax.nn.sigmoid(x)
    loss = (-float(alpha) * (1.0 - pt) ** float(gamma) * t * jnp.log(pt)
            - (1.0 - float(alpha)) * pt ** float(gamma) * (1.0 - t) * jnp.log(1.0 - pt))
    return jnp.mean(loss) if reduction else loss


if __name__ == "__main__":
    key = jax.random.PRNGKey(0)
    k1, k2, k3, k4 = jax.random.split(key, 4)

    # 1) Spec-shaped NCHW discriminator logits / binary targets (defaults).
    x = jax.random.normal(k1, (2, 4, 16, 16), dtype=jnp.float32)
    t = (jax.random.uniform(k2, (2, 4, 16, 16)) > 0.5).astype(jnp.float32)

    out = jax.block_until_ready(focal_with_logits_loss(x, t))
    ref = _reference(x, t)
    assert jnp.allclose(out, ref, rtol=1e-5, atol=1e-5), (out, ref)

    out_map = jax.block_until_ready(focal_with_logits_loss(x, t, reduction=False))
    ref_map = _reference(x, t, reduction=False)
    assert out_map.shape == x.shape and out_map.dtype == jnp.float32
    assert jnp.allclose(out_map, ref_map, rtol=1e-5, atol=1e-6)

    # 2) bf16 inputs stay bf16 in HBM; math is f32 in-kernel.
    xb = x.astype(jnp.bfloat16)
    tb = t.astype(jnp.bfloat16)
    out_b = jax.block_until_ready(focal_with_logits_loss(xb, tb))
    ref_b = _reference(xb, tb)
    assert jnp.allclose(out_b, ref_b, rtol=1e-5, atol=1e-5), (out_b, ref_b)

    # bf16 map path writes bf16 (native-dtype output cuts HBM write traffic).
    out_bm = jax.block_until_ready(focal_with_logits_loss(xb, tb, reduction=False))
    assert out_bm.dtype == jnp.bfloat16 and out_bm.shape == x.shape
    ref_bm = _reference(xb, tb, reduction=False)
    assert jnp.allclose(out_bm.astype(jnp.float32), ref_bm, rtol=2e-2, atol=2e-2)

    # 3) Ragged element count (not a multiple of 128) with alpha != 1 so the
    #    padded tail would contribute nonzero loss if masking were wrong.
    xr = jax.random.normal(k3, (3, 5, 7, 11), dtype=jnp.float32)
    tr = (jax.random.uniform(k4, (3, 5, 7, 11)) > 0.5).astype(jnp.float32)
    out_r = jax.block_until_ready(
        focal_with_logits_loss(xr, tr, alpha=0.25, gamma=2.0))
    ref_r = _reference(xr, tr, alpha=0.25, gamma=2.0)
    assert jnp.allclose(out_r, ref_r, rtol=1e-5, atol=1e-5), (out_r, ref_r)

    out_rm = jax.block_until_ready(
        focal_with_logits_loss(xr, tr, alpha=0.25, gamma=2.0, reduction=False))
    ref_rm = _reference(xr, tr, alpha=0.25, gamma=2.0, reduction=False)
    assert jnp.allclose(out_rm, ref_rm, rtol=1e-5, atol=1e-6)

    # 4) Multi-block grid with an odd block count (exercises the 2-partition
    #    parallel reduction + the clamped redundant tile) via a small tile.
    xm = jax.random.normal(k1, (6, 4, 128), dtype=jnp.float32)
    tgt_m = (jax.random.uniform(k2, (6, 4, 128)) > 0.5).astype(jnp.float32)
    out_m = jax.block_until_ready(
        focal_with_logits_loss(xm, tgt_m, alpha=0.5, gamma=3.0, max_tile_rows=8))
    ref_m = _reference(xm, tgt_m, alpha=0.5, gamma=3.0)
    assert jnp.allclose(out_m, ref_m, rtol=1e-5, atol=1e-5), (out_m, ref_m)

    # 5) Row count not divisible by the tile (exercises the row-pad fallback
    #    and the partial-tile mask across multiple blocks).
    xp = jax.random.normal(k3, (10, 128), dtype=jnp.float32)
    tp = (jax.random.uniform(k4, (10, 128)) > 0.5).astype(jnp.float32)
    out_p = jax.block_until_ready(
        focal_with_logits_loss(xp, tp, alpha=0.25, gamma=3.0, max_tile_rows=8))
    ref_p = _reference(xp, tp, alpha=0.25, gamma=3.0)
    assert jnp.allclose(out_p, ref_p, rtol=1e-5, atol=1e-5), (out_p, ref_p)

    print("KERNEL_OK")
</pallas_src>

<mosaic_0001>
module attributes {stable_mosaic.version = 11 : i64} {
  func.func @_focal_sum_kernel(%arg0: i32, %arg1: i32, %arg2: memref<16x128xf32, #tpu.memory_space<vmem>>, %arg3: memref<16x128xf32, #tpu.memory_space<vmem>>, %arg4: memref<8x128xf32, #tpu.memory_space<vmem>>) attributes {dimension_semantics = [#tpu.dimension_semantics<parallel>, #tpu.dimension_semantics<arbitrary>], iteration_bounds = array<i64: 1, 1>, scalar_prefetch = 0 : i64, scratch_operands = 0 : i64, tpu.core_type = #tpu.core_type<tc>, window_params = [{transform_indices = @transform_0, window_bounds = array<i64: 16, 128>}, {transform_indices = @transform_1, window_bounds = array<i64: 16, 128>}, {transform_indices = @transform_2, window_bounds = array<i64: 8, 128>}]} {
    %c0_i32 = arith.constant 0 : i32
    %0 = arith.cmpi eq, %arg1, %c0_i32 : i32
    %1 = arith.extui %0 : i1 to i32
    %c0_i32_0 = arith.constant 0 : i32
    %2 = arith.cmpi ne, %1, %c0_i32_0 : i32
    scf.if %2 {
      %cst_19 = arith.constant 0.000000e+00 : f32
      %51 = vector.broadcast %cst_19 : f32 to vector<8x128xf32>
      %c0_20 = arith.constant 0 : index
      %c0_21 = arith.constant 0 : index
      %52 = vector.load %arg4[%c0_20, %c0_21] : memref<8x128xf32, #tpu.memory_space<vmem>>, vector<8x128xf32>
      tpu.vector_store %arg4[%c0_20, %c0_21], %51 {strides = array<i32>} : memref<8x128xf32, #tpu.memory_space<vmem>>, vector<8x128xf32>,
    } else {
    }
    %c0 = arith.constant 0 : index
    %c0_1 = arith.constant 0 : index
    %3 = vector.load %arg2[%c0, %c0_1] : memref<16x128xf32, #tpu.memory_space<vmem>>, vector<16x128xf32>
    %c0_2 = arith.constant 0 : index
    %c0_3 = arith.constant 0 : index
    %4 = vector.load %arg3[%c0_2, %c0_3] : memref<16x128xf32, #tpu.memory_space<vmem>>, vector<16x128xf32>
    %c0_4 = arith.constant 0 : index
    %c0_5 = arith.constant 0 : index
    %5 = vector.load %arg4[%c0_4, %c0_5] : memref<8x128xf32, #tpu.memory_space<vmem>>, vector<8x128xf32>
    %6 = math.absf %3 : vector<16x128xf32>
    %cst = arith.constant 0.000000e+00 : f32
    %7 = vector.broadcast %cst : f32 to vector<16x128xf32>
    %8 = arith.subf %7, %6 : vector<16x128xf32>
    %9 = math.exp %8 : vector<16x128xf32>
    %cst_6 = arith.constant 1.000000e+00 : f32
    %10 = vector.broadcast %cst_6 : f32 to vector<16x128xf32>
    %11 = arith.addf %10, %9 : vector<16x128xf32>
    %cst_7 = arith.constant 1.000000e+00 : f32
    %12 = vector.broadcast %cst_7 : f32 to vector<16x128xf32>
    %13 = arith.divf %12, %11 : vector<16x128xf32>
    %14 = arith.mulf %9, %13 : vector<16x128xf32>
    %cst_8 = arith.constant 1.000000e+00 : f32
    %15 = vector.broadcast %cst_8 : f32 to vector<16x128xf32>
    %16 = arith.addf %15, %9 : vector<16x128xf32>
    %17 = math.log %16 : vector<16x128xf32>
    %cst_9 = arith.constant 0.000000e+00 : f32
    %18 = vector.broadcast %cst_9 : f32 to vector<16x128xf32>
    %19 = arith.cmpf oge, %3, %18 : vector<16x128xf32>
    %20 = arith.select %19, %13, %14 : vector<16x128xi1>, vector<16x128xf32>
    %21 = arith.select %19, %14, %13 : vector<16x128xi1>, vector<16x128xf32>
    %cst_10 = arith.constant 0.000000e+00 : f32
    %22 = vector.broadcast %cst_10 : f32 to vector<16x128xf32>
    %23 = arith.subf %22, %17 : vector<16x128xf32>
    %24 = arith.subf %3, %17 : vector<16x128xf32>
    %25 = arith.select %19, %23, %24 : vector<16x128xi1>, vector<16x128xf32>
    %cst_11 = arith.constant 0.000000e+00 : f32
    %26 = vector.broadcast %cst_11 : f32 to vector<16x128xf32>
    %27 = arith.subf %26, %3 : vector<16x128xf32>
    %28 = arith.subf %27, %17 : vector<16x128xf32>
    %cst_12 = arith.constant 0.000000e+00 : f32
    %29 = vector.broadcast %cst_12 : f32 to vector<16x128xf32>
    %30 = arith.subf %29, %17 : vector<16x128xf32>
    %31 = arith.select %19, %28, %30 : vector<16x128xi1>, vector<16x128xf32>
    %32 = arith.mulf %21, %21 : vector<16x128xf32>
    %33 = arith.mulf %21, %32 : vector<16x128xf32>
    %34 = arith.mulf %20, %20 : vector<16x128xf32>
    %35 = arith.mulf %20, %34 : vector<16x128xf32>
    %cst_13 = arith.constant -1.000000e+00 : f32
    %36 = vector.broadcast %cst_13 : f32 to vector<16x128xf32>
    %37 = arith.mulf %36, %33 : vector<16x128xf32>
    %38 = arith.mulf %37, %4 : vector<16x128xf32>
    %39 = arith.mulf %38, %25 : vector<16x128xf32>
    %cst_14 = arith.constant 0.000000e+00 : f32
    %40 = vector.broadcast %cst_14 : f32 to vector<16x128xf32>
    %41 = arith.mulf %40, %35 : vector<16x128xf32>
    %cst_15 = arith.constant 1.000000e+00 : f32
    %42 = vector.broadcast %cst_15 : f32 to vector<16x128xf32>
    %43 = arith.subf %42, %4 : vector<16x128xf32>
    %44 = arith.mulf %41, %43 : vector<16x128xf32>
    %45 = arith.mulf %44, %31 : vector<16x128xf32>
    %46 = arith.subf %39, %45 : vector<16x128xf32>
    %47 = vector.shape_cast %46 : vector<16x128xf32> to vector<2x8x128xf32>
    %cst_16 = arith.constant dense<0.000000e+00> : vector<8x128xf32>
    %48 = vector.multi_reduction <add>, %47, %cst_16 [0] : vector<2x8x128xf32> to vector<8x128xf32>
    %49 = arith.addf %5, %48 : vector<8x128xf32>
    %c0_17 = arith.constant 0 : index
    %c0_18 = arith.constant 0 : index
    %50 = vector.load %arg4[%c0_17, %c0_18] : memref<8x128xf32, #tpu.memory_space<vmem>>, vector<8x128xf32>
    tpu.vector_store %arg4[%c0_17, %c0_18], %49 {strides = array<i32>} : memref<8x128xf32, #tpu.memory_space<vmem>>, vector<8x128xf32>,
    return
  }
  func.func @transform_0(%arg0: i32, %arg1: i32) -> (i32, i32) {
    %c1_i32 = arith.constant 1 : i32
    %0 = arith.muli %arg0, %c1_i32 : i32
    %1 = arith.addi %0, %arg1 : i32
    %c0_i32 = arith.constant 0 : i32
    %2 = arith.minsi %1, %c0_i32 : i32
    %c0_i32_0 = arith.constant 0 : i32
    %c0_i32_1 = arith.constant 0 : i32
    return %2, %c0_i32_0 : i32, i32
  }
  func.func @transform_1(%arg0: i32, %arg1: i32) -> (i32, i32) {
    %c1_i32 = arith.constant 1 : i32
    %0 = arith.muli %arg0, %c1_i32 : i32
    %1 = arith.addi %0, %arg1 : i32
    %c0_i32 = arith.constant 0 : i32
    %2 = arith.minsi %1, %c0_i32 : i32
    %c0_i32_0 = arith.constant 0 : i32
    %c0_i32_1 = arith.constant 0 : i32
    return %2, %c0_i32_0 : i32, i32
  }
  func.func @transform_2(%arg0: i32, %arg1: i32) -> (i32, i32) {
    %c0_i32 = arith.constant 0 : i32
    %c0_i32_0 = arith.constant 0 : i32
    return %arg0, %c0_i32 : i32, i32
  }
}

</mosaic_0001>

<llo_original>
// kernel: tpu_custom_call.1
$region0: #{tpu_custom_call.1}
  #allocation0 [shape = 'u32[]', space=smem, size = 0x4, offset = 0x4, fixed_abs, tag = 'smem constant byte address 0x4 - core index']
  #allocation1 [shape = 'u32[144,128]{1,0:T(1,128)}', space=vmem, size = 0x12000, scoped, tag = 'internal scratch']
  %s0 = inlined_call_operand.hbm [shape: f32[16,128], index: 0, kind: input, shape index: {}]
  %s1 = inlined_call_operand.hbm [shape: f32[16,128], index: 1, kind: input, shape index: {}]
  %s2 = inlined_call_operand.hbm [shape: f32[8,128], index: 2, kind: output, shape index: {}]
  %s3 = sld [smem:[#allocation0]]
  $region30: #{tpu_custom_call.1} parent=0
    _
  %s5 = ssub.s32 1, %s3
  %s6 = scalar_select 0, %s5, %s3
  $region1: #{tpu_custom_call.1} parent=0
    #allocation2 [shape = 'u8[8192]{0}', space=vmem, size = 0x2000, scoped, tag = 'input window, operand 0, single buffered']
    #allocation3 [shape = 's32[1]{0}', space=sflag, size = 0x4, scoped, tag = 'scoped memory for tpu_custom_call.1']
    #allocation4 [shape = 's32[1]{0}', space=sflag, size = 0x4, scoped, tag = 'scoped memory for tpu_custom_call.1']
    #allocation5 [shape = 'u8[8192]{0}', space=vmem, size = 0x2000, scoped, tag = 'input window, operand 1, single buffered']
    #allocation6 [shape = 's32[1]{0}', space=sflag, size = 0x4, scoped, tag = 'scoped memory for tpu_custom_call.1']
    #allocation7 [shape = 'u8[4096]{0}', space=vmem, size = 0x1000, scoped, tag = 'output window, operand 0, single buffered']
    %7 = vsyncpa [#allocation3], 0
    %8 = vsyncpa [#allocation6], 0
    %9 = vsyncpa [#allocation4], 0
    // Predicated region
    $region2: #{tpu_custom_call.1} parent=1 // pred_check
      _
    $region3: #{tpu_custom_call.1} parent=1 // pred_check_branch
      %11 = sbr.rel (0) target = $region5
    $region4: #{tpu_custom_call.1} parent=1 // pred_region
      %s12 = sadd.s32 0, 0
      %p13 = scmp.lt.s32.totalorder %s12, 0
      %s14 = scalar_select %p13, %s12, 0
      %s15 = smul.u32 2, %s14
      %s17 = ssub.s32 256, 256
      %18 = vsyncadd [#allocation3], %s17
      %s19 = smul.addr %s15, 128
      %s20 = scalar_lea.hbm %s0, %s19
      %s21 = sshll.u32 [#allocation2], 4
      %s22 = int_to_ptr.vmem [resolvable:$true] %s21
      %27 = dma.hbm_to_vmem [thread:$0]  %s20, 256, %s22, [#allocation3], 128, 128, 8
    $region5: #{tpu_custom_call.1} parent=1 // pred_fallthru
      _
    // Predicated region
    $region6: #{tpu_custom_call.1} parent=1 // pred_check
      _
    $region7: #{tpu_custom_call.1} parent=1 // pred_check_branch
      %29 = sbr.rel (0) target = $region9
    $region8: #{tpu_custom_call.1} parent=1 // pred_region
      %s30 = sadd.s32 0, 0
      %p31 = scmp.lt.s32.totalorder %s30, 0
      %s32 = scalar_select %p31, %s30, 0
      %s33 = smul.u32 2, %s32
      %s35 = ssub.s32 256, 256
      %36 = vsyncadd [#allocation6], %s35
      %s37 = smul.addr %s33, 128
      %s38 = scalar_lea.hbm %s1, %s37
      %s39 = sshll.u32 [#allocation5], 4
      %s40 = int_to_ptr.vmem [resolvable:$true] %s39
      %45 = dma.hbm_to_vmem [thread:$0]  %s38, 256, %s40, [#allocation6], 128, 128, 8
    $region9: #{tpu_custom_call.1} parent=1 // pred_fallthru
      _
    // Predicated region
    $region10: #{tpu_custom_call.1} parent=1 // pred_check
      _
    $region11: #{tpu_custom_call.1} parent=1 // pred_check_branch
      %47 = sbr.rel (0) target = $region13
    $region12: #{tpu_custom_call.1} parent=1 // pred_region
      %48 = dma.done [#allocation3], 256
    $region13: #{tpu_custom_call.1} parent=1 // pred_fallthru
      _
    // Predicated region
    $region14: #{tpu_custom_call.1} parent=1 // pred_check
      _
    $region15: #{tpu_custom_call.1} parent=1 // pred_check_branch
      %50 = sbr.rel (0) target = $region17
    $region16: #{tpu_custom_call.1} parent=1 // pred_region
      %51 = dma.done [#allocation6], 256
    $region17: #{tpu_custom_call.1} parent=1 // pred_fallthru
      _
    %s52 = sadd.s32 0, 0
    %p53 = scmp.lt.s32.totalorder %s52, 0
    %s54 = scalar_select %p53, %s52, 0
    %s55 = smul.u32 2, %s54
    %s56 = sadd.s32 0, 0
    %p57 = scmp.lt.s32.totalorder %s56, 0
    %s58 = scalar_select %p57, %s56, 0
    %s59 = smul.u32 2, %s58
    %p60 = scmp.eq.s32.totalorder 0, 0
    // Predicated region
    $region18: #{tpu_custom_call.1} parent=1 // pred_check
      %p61 = pneg %p60
    $region19: #{tpu_custom_call.1} parent=1 // pred_check_branch
      %63 = sbr.rel (%p61) target = $region21
    $region20: #{tpu_custom_call.1} parent=1 // pred_region
      %64 = vst [vmem:[#allocation7] sm:$0xff] 0.0
    $region21: #{tpu_custom_call.1} parent=1 // pred_fallthru
      _
    %v65 = vld [vmem:[#allocation2] sm:$0xff]
    %v66 = vld [vmem:[#allocation2 + $0x8] sm:$0xff]
    %v67 = vld [vmem:[#allocation5] sm:$0xff]
    %v68 = vld [vmem:[#allocation5 + $0x8] sm:$0xff]
    %v69 = vld [vmem:[#allocation7] sm:$0xff]
    %v70 = vand.u32 2147483647, %v65
    %v71 = vand.u32 2147483647, %v66
    %v72 = vsub.f32 0.0, %v70
    %v73 = vsub.f32 0.0, %v71
    %v74 = vmul.f32 %v72, 1.442695
    %v75 = vpow.pop %v74
    %v76 = vmul.f32 %v73, 1.442695
    %v77 = vpow.pop %v76
    %v78 = vadd.f32 %v75, 1.0
    %v79 = vadd.f32 %v77, 1.0
    %v80 = vrcp.pop %v78
    %v81 = vmul.f32 1.0, %v80
    %v82 = vrcp.pop %v79
    %v83 = vmul.f32 1.0, %v82
    %v84 = vmul.f32 %v75, %v81
    %v85 = vmul.f32 %v77, %v83
    %v86 = vlog2.pop %v78
    %v87 = vmul.f32 %v86, 0.6931472
    %v88 = vlog2.pop %v79
    %v89 = vmul.f32 %v88, 0.6931472
    %vm90 = vcmp.ge.f32.partialorder %v65, 0.0
    %vm91 = vcmp.ge.f32.partialorder %v66, 0.0
    %v92 = vsel %vm90, %v81, %v84
    %v93 = vsel %vm91, %v83, %v85
    %v94 = vsel %vm90, %v84, %v81
    %v95 = vsel %vm91, %v85, %v83
    %v96 = vsub.f32 0.0, %v87
    %v97 = vsub.f32 0.0, %v89
    %v98 = vsub.f32 %v65, %v87
    %v99 = vsub.f32 %v66, %v89
    %v100 = vsel %vm90, %v96, %v98
    %v101 = vsel %vm91, %v97, %v99
    %v102 = vsub.f32 0.0, %v65
    %v103 = vsub.f32 0.0, %v66
    %v104 = vsub.f32 %v102, %v87
    %v105 = vsub.f32 %v103, %v89
    %v106 = vsel %vm90, %v104, %v96
    %v107 = vsel %vm91, %v105, %v97
    %v108 = vmul.f32 %v94, %v94
    %v109 = vmul.f32 %v95, %v95
    %v110 = vmul.f32 %v94, %v108
    %v111 = vmul.f32 %v95, %v109
    %v112 = vmul.f32 %v92, %v92
    %v113 = vmul.f32 %v93, %v93
    %v114 = vmul.f32 %v92, %v112
    %v115 = vmul.f32 %v93, %v113
    %v116 = vmul.f32 %v110, -1.0
    %v117 = vmul.f32 %v111, -1.0
    %v118 = vmul.f32 %v116, %v67
    %v119 = vmul.f32 %v117, %v68
    %v120 = vmul.f32 %v118, %v100
    %v121 = vmul.f32 %v119, %v101
    %v122 = vmul.f32 %v114, 0.0
    %v123 = vmul.f32 %v115, 0.0
    %v124 = vsub.f32 1.0, %v67
    %v125 = vsub.f32 1.0, %v68
    %v126 = vmul.f32 %v122, %v124
    %v127 = vmul.f32 %v123, %v125
    %v128 = vmul.f32 %v126, %v106
    %v129 = vmul.f32 %v127, %v107
    %v130 = vsub.f32 %v120, %v128
    %v131 = vsub.f32 %v121, %v129
    %v132 = vadd.f32 %v130, %v131
    %v133 = vadd.f32 %v69, %v132
    %134 = vst [vmem:[#allocation7] sm:$0xff] %v133
    // Predicated region
    $region22: #{tpu_custom_call.1} parent=1 // pred_check
      _
    $region23: #{tpu_custom_call.1} parent=1 // pred_check_branch
      %136 = sbr.rel (0) target = $region25
    $region24: #{tpu_custom_call.1} parent=1 // pred_region
      %s138 = ssub.s32 128, 128
      %139 = vsyncadd [#allocation4], %s138
      %s141 = sshll.u32 [#allocation7], 4
      %s142 = int_to_ptr.vmem [resolvable:$true] %s141
      %144 = dma.vmem_to_hbm [thread:$0]  %s142, 128, %s2, [#allocation4]
    $region25: #{tpu_custom_call.1} parent=1 // pred_fallthru
      _
    // Predicated region
    $region26: #{tpu_custom_call.1} parent=1 // pred_check
      _
    $region27: #{tpu_custom_call.1} parent=1 // pred_check_branch
      %146 = sbr.rel (0) target = $region29
    $region28: #{tpu_custom_call.1} parent=1 // pred_region
      %147 = dma.done [#allocation4], 128
    $region29: #{tpu_custom_call.1} parent=1 // pred_fallthru
      _
    %148 = vsyncpa [#allocation3], 1
    %149 = vsyncpa [#allocation6], 1
    %150 = vsyncpa [#allocation4], 1

</llo_original>
